<compile_context>
chip_gen: v7x
topology: tpu7x:2x2x1
jax: 0.10.0
libtpu: 0.0.40
codegen_flags: <defaults>
</compile_context>

<pallas_src>
import functools

import jax
import jax.numpy as jnp
from jax import lax
from jax.experimental import pallas as pl
from jax.experimental.pallas import tpu as pltpu

_NEG_INF = -1e30  # exp() underflows to exactly 0 for masked entries (no inf-inf NaN risk)


def _mhsa_kernel(x_ref, w_in_ref, b_in_ref, w_out_ref, b_out_ref,
                 out_ref, *maybe_wts,
                 nheads, q_tile, n_q_tiles, use_causal_masking, return_weights):
    """Grid = (batch, q_tile). All heads handled inside one step.

    x_ref     : (1, L, D)  bf16  full sequence for this batch element
    w_in_ref  : (D, 3D)    bf16  indense weight (cols = [q | k | v], head-major,
                                 1/sqrt(hd) folded into q cols); VMEM-resident
    b_in_ref  : (1, 3D)    f32   indense bias (q part pre-scaled); VMEM-resident
    w_out_ref : (D, D)     bf16  outdense weight, pre-transposed; VMEM-resident
    b_out_ref : (1, D)     f32   outdense bias; VMEM-resident
    out_ref   : (1, tq, D)       output tile for this (batch, q-tile)
    wts_ref   : (1, H, tq, L)    attention weights (only if return_weights)
    """
    wts_ref = maybe_wts[0] if return_weights else None
    qi = pl.program_id(1)
    L = x_ref.shape[1]
    D = x_ref.shape[2]
    hd = D // nheads

    x_all = x_ref[0]  # (L, D) bf16

    # ---- fused input projection (single wide MXU matmul, f32 accumulation) ----
    if n_q_tiles == 1:
        q_row0 = 0
        qkv = jnp.dot(x_all, w_in_ref[...],
                      preferred_element_type=jnp.float32) + b_in_ref[...]   # (L, 3D)
        q_all = qkv[:, :D]                                                   # (tq=L, D)
        kv_all = qkv[:, D:]                                                  # (L, 2D)
    else:
        # q only for this tile's rows; k/v for the whole sequence.
        q_row0 = pl.multiple_of(qi * q_tile, q_tile)
        x_q = x_ref[0, pl.ds(q_row0, q_tile), :]                             # (tq, D)
        q_all = jnp.dot(x_q, w_in_ref[:, :D],
                        preferred_element_type=jnp.float32) + b_in_ref[:, :D]
        kv_all = jnp.dot(x_all, w_in_ref[:, D:],
                         preferred_element_type=jnp.float32) + b_in_ref[:, D:]

    # bf16 MXU operands, cast once for all heads.
    q_all = q_all.astype(jnp.bfloat16)
    kv_all = kv_all.astype(jnp.bfloat16)

    if use_causal_masking:
        # Built once per (batch, q-tile) step and reused by every head.
        row = q_row0 + lax.broadcasted_iota(jnp.int32, (q_tile, L), 0)
        col = lax.broadcasted_iota(jnp.int32, (q_tile, L), 1)
        keep = col <= row

    head_outs = []
    for h in range(nheads):  # static loop: head index is a Python int
        q = q_all[:, h * hd:(h + 1) * hd]                    # (tq, hd), scale pre-folded
        k = kv_all[:, h * hd:(h + 1) * hd]                   # (L, hd)
        v = kv_all[:, D + h * hd:D + (h + 1) * hd]           # (L, hd)

        # scores: contract both operands on the head dim (no in-kernel transpose)
        s = lax.dot_general(q, k, (((1,), (1,)), ((), ())),
                            preferred_element_type=jnp.float32)              # (tq, L)
        if use_causal_masking:
            s = jnp.where(keep, s, _NEG_INF)

        # numerically-stable softmax in f32 (v5e-safe); divide goes to the EUP slot
        m = jnp.max(s, axis=-1, keepdims=True)
        e = jnp.exp(s - m)
        inv = pl.reciprocal(jnp.sum(e, axis=-1, keepdims=True), approx=True)
        p = e * inv
        if return_weights:
            wts_ref[0, h] = p.astype(wts_ref.dtype)

        head_outs.append(jnp.dot(p.astype(jnp.bfloat16), v,
                                 preferred_element_type=jnp.float32))        # (tq, hd)

    # Static concat over heads, then ONE K=D output projection.
    concat = jnp.concatenate(head_outs, axis=1).astype(jnp.bfloat16)         # (tq, D)
    out = jnp.dot(concat, w_out_ref[...],
                  preferred_element_type=jnp.float32) + b_out_ref[...]
    out_ref[0] = out.astype(out_ref.dtype)


def mhsa_forward(x, w_in, b_in, w_out, b_out, *, nheads,
                 use_causal_masking=False, q_block=None,
                 return_weights=True, weights_dtype=jnp.bfloat16):
    """x: (B, L, D); w_in/b_in/w_out/b_out in PyTorch Linear layout (out, in)/(out,)."""
    B, L, D = x.shape
    if D % nheads != 0:
        raise ValueError(f"nheads={nheads} does not divide dim={D}")
    hd = D // nheads

    # Query tiling (bounds live L^2 data to q_tile*L; needed for v7x at long L).
    if q_block is None or q_block >= L or (L % q_block) != 0 or (q_block % 8) != 0:
        q_tile = L
    else:
        q_tile = q_block
    n_q_tiles = L // q_tile

    # One-time wrapper-side layout plumbing (PyTorch layout -> MXU layout).
    scale = 1.0 / (hd ** 0.5)
    w_in_t = jnp.asarray(w_in, jnp.float32).T                      # (D, 3D): [q | k | v]
    w_in_t = w_in_t.at[:, :D].multiply(scale)                      # fold 1/sqrt(hd) into q
    b_in_f = jnp.asarray(b_in, jnp.float32).reshape(1, 3 * D)
    b_in_f = b_in_f.at[:, :D].multiply(scale)
    w_out_t = jnp.asarray(w_out, jnp.float32).T                    # (D, D)
    b_out_f = jnp.asarray(b_out, jnp.float32).reshape(1, D)

    # bf16 MXU operands (f32 accumulation happens in-kernel); biases stay f32.
    x_in = x.astype(jnp.bfloat16)
    w_in_bf = w_in_t.astype(jnp.bfloat16)
    w_out_bf = w_out_t.astype(jnp.bfloat16)

    # VMEM limit derived from the chip (~96 MiB on v5e/v6e, ~48 MiB on v7x).
    try:
        vmem_cap = pltpu.get_tpu_info().vmem_capacity_bytes
    except Exception:
        vmem_cap = 128 * 1024 * 1024
    vmem_limit = int(vmem_cap * 3 // 4)

    out_spec = pl.BlockSpec((1, q_tile, D), lambda b, qi: (b, qi, 0))
    if return_weights:
        out_shape = (jax.ShapeDtypeStruct((B, L, D), x.dtype),
                     jax.ShapeDtypeStruct((B, nheads, L, L), weights_dtype))
        out_specs = [out_spec,
                     pl.BlockSpec((1, nheads, q_tile, L), lambda b, qi: (b, 0, qi, 0))]
    else:
        out_shape = jax.ShapeDtypeStruct((B, L, D), x.dtype)
        out_specs = out_spec

    kernel = functools.partial(
        _mhsa_kernel, nheads=nheads, q_tile=q_tile, n_q_tiles=n_q_tiles,
        use_causal_masking=use_causal_masking, return_weights=return_weights)

    return pl.pallas_call(
        kernel,
        out_shape=out_shape,
        grid_spec=pltpu.PrefetchScalarGridSpec(
            num_scalar_prefetch=0,
            grid=(B, n_q_tiles),
            in_specs=[
                pl.BlockSpec((1, L, D), lambda b, qi: (b, 0, 0)),   # x (fetched once per batch)
                pl.BlockSpec((D, 3 * D), lambda b, qi: (0, 0)),     # indense weight (resident)
                pl.BlockSpec((1, 3 * D), lambda b, qi: (0, 0)),     # indense bias   (resident)
                pl.BlockSpec((D, D), lambda b, qi: (0, 0)),         # outdense weight (resident)
                pl.BlockSpec((1, D), lambda b, qi: (0, 0)),         # outdense bias  (resident)
            ],
            out_specs=out_specs,
        ),
        compiler_params=pltpu.CompilerParams(
            dimension_semantics=("parallel", "parallel"),
            vmem_limit_bytes=vmem_limit,
        ),
    )(x_in, w_in_bf, b_in_f, w_out_bf, b_out_f)


def _reference(x, w_in, b_in, w_out, b_out, nheads, use_causal_masking):
    # Pure-JAX transcription of the PyTorch forward for validation.
    B, L, D = x.shape
    hd = D // nheads
    qkv = x @ w_in.T + b_in                                          # (B, L, 3D)
    qkv = qkv.reshape(B, L, 3, D).transpose(2, 0, 1, 3)              # (3, B, L, D)
    qkvs = qkv.reshape(3, B, L, nheads, hd).transpose(0, 1, 3, 2, 4)
    qs, ks, vs = qkvs[0], qkvs[1], qkvs[2]                           # (B, H, L, hd)
    dots = qs @ jnp.swapaxes(ks, -2, -1) / (hd ** 0.5)
    if use_causal_masking:
        mask = jnp.tril(jnp.ones((L, L)))
        dots = dots + jnp.log(mask)
    weights = jax.nn.softmax(dots, axis=-1)
    ave = weights @ vs                                               # (B, H, L, hd)
    concat = jnp.swapaxes(ave, 1, 2).reshape(B, L, D)
    return concat @ w_out.T + b_out, weights


def _run_case(B, L, dim, nheads, causal, q_block, weights_dtype):
    key = jax.random.PRNGKey(0)
    kx, k1, k2, k3, k4 = jax.random.split(key, 5)
    x = jax.random.normal(kx, (B, L, dim), dtype=jnp.float32)
    # PyTorch Linear shapes: (out, in) and (out,).
    w_in = jax.random.normal(k1, (3 * dim, dim), dtype=jnp.float32) * 0.1
    b_in = jax.random.normal(k2, (3 * dim,), dtype=jnp.float32) * 0.1
    w_out = jax.random.normal(k3, (dim, dim), dtype=jnp.float32) * 0.1
    b_out = jax.random.normal(k4, (dim,), dtype=jnp.float32) * 0.1

    out, weights = mhsa_forward(x, w_in, b_in, w_out, b_out,
                                nheads=nheads, use_causal_masking=causal,
                                q_block=q_block, return_weights=True,
                                weights_dtype=weights_dtype)
    out, weights = jax.block_until_ready((out, weights))

    ref_out, ref_w = _reference(x, w_in, b_in, w_out, b_out, nheads, causal)
    assert out.shape == (B, L, dim) and weights.shape == (B, nheads, L, L)
    # Tolerances account for bf16 MXU operands + the EUP approximate reciprocal.
    assert jnp.allclose(out.astype(jnp.float32), ref_out, atol=3e-2, rtol=3e-2), \
        f"out mismatch (L={L}, causal={causal})"
    assert jnp.allclose(weights.astype(jnp.float32), ref_w, atol=2e-2, rtol=2e-2), \
        f"weights mismatch (L={L}, causal={causal})"

    # Also exercise the no-weights-writeback fast path.
    out_only = mhsa_forward(x, w_in, b_in, w_out, b_out,
                            nheads=nheads, use_causal_masking=causal,
                            q_block=q_block, return_weights=False)
    out_only = jax.block_until_ready(out_only)
    assert out_only.shape == (B, L, dim)
    assert jnp.allclose(out_only.astype(jnp.float32), ref_out, atol=3e-2, rtol=3e-2), \
        f"out-only mismatch (L={L}, causal={causal})"


if __name__ == "__main__":
    # Small config: single q-tile -> fused (L,D)@(D,3D) projection path, f32 weights out.
    for causal in (False, True):
        _run_case(B=2, L=8, dim=32, nheads=4, causal=causal,
                  q_block=None, weights_dtype=jnp.float32)
    # Tiled config: exercises the query-tile grid axis + bf16 weights writeback.
    for causal in (False, True):
        _run_case(B=1, L=256, dim=64, nheads=2, causal=causal,
                  q_block=128, weights_dtype=jnp.bfloat16)
    print("KERNEL_OK")
</pallas_src>

<mosaic_0001>
module attributes {stable_mosaic.version = 11 : i64} {
  func.func @_mhsa_kernel(%arg0: i32, %arg1: i32, %arg2: memref<1x8x32xbf16, #tpu.memory_space<vmem>>, %arg3: memref<32x96xbf16, #tpu.memory_space<vmem>>, %arg4: memref<1x96xf32, #tpu.memory_space<vmem>>, %arg5: memref<32x32xbf16, #tpu.memory_space<vmem>>, %arg6: memref<1x32xf32, #tpu.memory_space<vmem>>, %arg7: memref<1x8x32xf32, #tpu.memory_space<vmem>>, %arg8: memref<1x4x8x8xf32, #tpu.memory_space<vmem>>) attributes {dimension_semantics = [#tpu.dimension_semantics<parallel>, #tpu.dimension_semantics<parallel>], iteration_bounds = array<i64: 2, 1>, scalar_prefetch = 0 : i64, scratch_operands = 0 : i64, tpu.core_type = #tpu.core_type<tc>, window_params = [{transform_indices = @transform_0, window_bounds = array<i64: 1, 8, 32>}, {pipeline_mode = #tpu.pipeline_mode<synchronous>, transform_indices = @transform_1, window_bounds = array<i64: 32, 96>}, {pipeline_mode = #tpu.pipeline_mode<synchronous>, transform_indices = @transform_2, window_bounds = array<i64: 1, 96>}, {pipeline_mode = #tpu.pipeline_mode<synchronous>, transform_indices = @transform_3, window_bounds = array<i64: 32, 32>}, {pipeline_mode = #tpu.pipeline_mode<synchronous>, transform_indices = @transform_4, window_bounds = array<i64: 1, 32>}, {transform_indices = @transform_5, window_bounds = array<i64: 1, 8, 32>}, {transform_indices = @transform_6, window_bounds = array<i64: 1, 4, 8, 8>}]} {
    %c0 = arith.constant 0 : index
    %c0_0 = arith.constant 0 : index
    %c0_1 = arith.constant 0 : index
    %0 = vector.load %arg2[%c0, %c0_0, %c0_1] : memref<1x8x32xbf16, #tpu.memory_space<vmem>>, vector<1x8x32xbf16>
    %1 = vector.shape_cast %0 : vector<1x8x32xbf16> to vector<8x32xbf16>
    %c0_2 = arith.constant 0 : index
    %c0_3 = arith.constant 0 : index
    %2 = vector.load %arg3[%c0_2, %c0_3] : memref<32x96xbf16, #tpu.memory_space<vmem>>, vector<32x96xbf16>
    %cst = arith.constant dense<0.000000e+00> : vector<8x96xf32>
    %3 = tpu.matmul %1, %2, %cst {dimension_numbers = #tpu.dot_dimension_numbers<[1], [0], [0], [1], [0, 0, 1, 1], [], []>} : vector<8x32xbf16>, vector<32x96xbf16>, vector<8x96xf32> -> vector<8x96xf32>
    %c0_4 = arith.constant 0 : index
    %c0_5 = arith.constant 0 : index
    %4 = vector.load %arg4[%c0_4, %c0_5] : memref<1x96xf32, #tpu.memory_space<vmem>>, vector<1x96xf32>
    %5 = vector.broadcast %4 : vector<1x96xf32> to vector<8x96xf32>
    %6 = arith.addf %3, %5 : vector<8x96xf32>
    %7 = vector.extract_strided_slice %6 {offsets = [0, 0], sizes = [8, 32], strides = [1, 1]} : vector<8x96xf32> to vector<8x32xf32>
    %8 = vector.extract_strided_slice %6 {offsets = [0, 32], sizes = [8, 64], strides = [1, 1]} : vector<8x96xf32> to vector<8x64xf32>
    %9 = arith.truncf %7 : vector<8x32xf32> to vector<8x32xbf16>
    %10 = arith.truncf %8 : vector<8x64xf32> to vector<8x64xbf16>
    %11 = vector.extract_strided_slice %9 {offsets = [0, 0], sizes = [8, 8], strides = [1, 1]} : vector<8x32xbf16> to vector<8x8xbf16>
    %12 = vector.extract_strided_slice %10 {offsets = [0, 0], sizes = [8, 8], strides = [1, 1]} : vector<8x64xbf16> to vector<8x8xbf16>
    %13 = vector.extract_strided_slice %10 {offsets = [0, 32], sizes = [8, 8], strides = [1, 1]} : vector<8x64xbf16> to vector<8x8xbf16>
    %cst_6 = arith.constant dense<0.000000e+00> : vector<8x8xf32>
    %14 = tpu.matmul %11, %12, %cst_6 {dimension_numbers = #tpu.dot_dimension_numbers<[1], [1], [0], [0], [0, 0, 1, 0], [], []>} : vector<8x8xbf16>, vector<8x8xbf16>, vector<8x8xf32> -> vector<8x8xf32>
    %cst_7 = arith.constant dense<0xFF800000> : vector<8xf32>
    %15 = vector.multi_reduction <maximumf>, %14, %cst_7 [1] : vector<8x8xf32> to vector<8xf32>
    %16 = vector.shape_cast %15 : vector<8xf32> to vector<8x1xf32>
    %17 = vector.broadcast %16 : vector<8x1xf32> to vector<8x8xf32>
    %18 = arith.subf %14, %17 : vector<8x8xf32>
    %19 = math.exp %18 : vector<8x8xf32>
    %cst_8 = arith.constant dense<0.000000e+00> : vector<8xf32>
    %20 = vector.multi_reduction <add>, %19, %cst_8 [1] : vector<8x8xf32> to vector<8xf32>
    %21 = vector.shape_cast %20 : vector<8xf32> to vector<8x1xf32>
    %22 = tpu.reciprocal %21 {approx = true} : vector<8x1xf32> -> vector<8x1xf32>
    %23 = vector.broadcast %22 : vector<8x1xf32> to vector<8x8xf32>
    %24 = arith.mulf %19, %23 : vector<8x8xf32>
    %c0_9 = arith.constant 0 : index
    %c0_10 = arith.constant 0 : index
    %c0_11 = arith.constant 0 : index
    %c0_12 = arith.constant 0 : index
    %25 = vector.load %arg8[%c0_9, %c0_10, %c0_11, %c0_12] : memref<1x4x8x8xf32, #tpu.memory_space<vmem>>, vector<1x1x8x8xf32>
    %26 = vector.shape_cast %25 : vector<1x1x8x8xf32> to vector<8x8xf32>
    %27 = vector.shape_cast %24 : vector<8x8xf32> to vector<1x1x8x8xf32>
    tpu.vector_store %arg8[%c0_9, %c0_10, %c0_11, %c0_12], %27 {strides = array<i32>} : memref<1x4x8x8xf32, #tpu.memory_space<vmem>>, vector<1x1x8x8xf32>,
    %28 = arith.truncf %24 : vector<8x8xf32> to vector<8x8xbf16>
    %cst_13 = arith.constant dense<0.000000e+00> : vector<8x8xf32>
    %29 = tpu.matmul %28, %13, %cst_13 {dimension_numbers = #tpu.dot_dimension_numbers<[1], [0], [0], [1], [0, 0, 1, 1], [], []>} : vector<8x8xbf16>, vector<8x8xbf16>, vector<8x8xf32> -> vector<8x8xf32>
    %30 = vector.extract_strided_slice %9 {offsets = [0, 8], sizes = [8, 8], strides = [1, 1]} : vector<8x32xbf16> to vector<8x8xbf16>
    %31 = vector.extract_strided_slice %10 {offsets = [0, 8], sizes = [8, 8], strides = [1, 1]} : vector<8x64xbf16> to vector<8x8xbf16>
    %32 = vector.extract_strided_slice %10 {offsets = [0, 40], sizes = [8, 8], strides = [1, 1]} : vector<8x64xbf16> to vector<8x8xbf16>
    %cst_14 = arith.constant dense<0.000000e+00> : vector<8x8xf32>
    %33 = tpu.matmul %30, %31, %cst_14 {dimension_numbers = #tpu.dot_dimension_numbers<[1], [1], [0], [0], [0, 0, 1, 0], [], []>} : vector<8x8xbf16>, vector<8x8xbf16>, vector<8x8xf32> -> vector<8x8xf32>
    %cst_15 = arith.constant dense<0xFF800000> : vector<8xf32>
    %34 = vector.multi_reduction <maximumf>, %33, %cst_15 [1] : vector<8x8xf32> to vector<8xf32>
    %35 = vector.shape_cast %34 : vector<8xf32> to vector<8x1xf32>
    %36 = vector.broadcast %35 : vector<8x1xf32> to vector<8x8xf32>
    %37 = arith.subf %33, %36 : vector<8x8xf32>
    %38 = math.exp %37 : vector<8x8xf32>
    %cst_16 = arith.constant dense<0.000000e+00> : vector<8xf32>
    %39 = vector.multi_reduction <add>, %38, %cst_16 [1] : vector<8x8xf32> to vector<8xf32>
    %40 = vector.shape_cast %39 : vector<8xf32> to vector<8x1xf32>
    %41 = tpu.reciprocal %40 {approx = true} : vector<8x1xf32> -> vector<8x1xf32>
    %42 = vector.broadcast %41 : vector<8x1xf32> to vector<8x8xf32>
    %43 = arith.mulf %38, %42 : vector<8x8xf32>
    %c0_17 = arith.constant 0 : index
    %c1 = arith.constant 1 : index
    %c0_18 = arith.constant 0 : index
    %c0_19 = arith.constant 0 : index
    %44 = vector.load %arg8[%c0_17, %c1, %c0_18, %c0_19] : memref<1x4x8x8xf32, #tpu.memory_space<vmem>>, vector<1x1x8x8xf32>
    %45 = vector.shape_cast %44 : vector<1x1x8x8xf32> to vector<8x8xf32>
    %46 = vector.shape_cast %43 : vector<8x8xf32> to vector<1x1x8x8xf32>
    tpu.vector_store %arg8[%c0_17, %c1, %c0_18, %c0_19], %46 {strides = array<i32>} : memref<1x4x8x8xf32, #tpu.memory_space<vmem>>, vector<1x1x8x8xf32>,
    %47 = arith.truncf %43 : vector<8x8xf32> to vector<8x8xbf16>
    %cst_20 = arith.constant dense<0.000000e+00> : vector<8x8xf32>
    %48 = tpu.matmul %47, %32, %cst_20 {dimension_numbers = #tpu.dot_dimension_numbers<[1], [0], [0], [1], [0, 0, 1, 1], [], []>} : vector<8x8xbf16>, vector<8x8xbf16>, vector<8x8xf32> -> vector<8x8xf32>
    %49 = vector.extract_strided_slice %9 {offsets = [0, 16], sizes = [8, 8], strides = [1, 1]} : vector<8x32xbf16> to vector<8x8xbf16>
    %50 = vector.extract_strided_slice %10 {offsets = [0, 16], sizes = [8, 8], strides = [1, 1]} : vector<8x64xbf16> to vector<8x8xbf16>
    %51 = vector.extract_strided_slice %10 {offsets = [0, 48], sizes = [8, 8], strides = [1, 1]} : vector<8x64xbf16> to vector<8x8xbf16>
    %cst_21 = arith.constant dense<0.000000e+00> : vector<8x8xf32>
    %52 = tpu.matmul %49, %50, %cst_21 {dimension_numbers = #tpu.dot_dimension_numbers<[1], [1], [0], [0], [0, 0, 1, 0], [], []>} : vector<8x8xbf16>, vector<8x8xbf16>, vector<8x8xf32> -> vector<8x8xf32>
    %cst_22 = arith.constant dense<0xFF800000> : vector<8xf32>
    %53 = vector.multi_reduction <maximumf>, %52, %cst_22 [1] : vector<8x8xf32> to vector<8xf32>
    %54 = vector.shape_cast %53 : vector<8xf32> to vector<8x1xf32>
    %55 = vector.broadcast %54 : vector<8x1xf32> to vector<8x8xf32>
    %56 = arith.subf %52, %55 : vector<8x8xf32>
    %57 = math.exp %56 : vector<8x8xf32>
    %cst_23 = arith.constant dense<0.000000e+00> : vector<8xf32>
    %58 = vector.multi_reduction <add>, %57, %cst_23 [1] : vector<8x8xf32> to vector<8xf32>
    %59 = vector.shape_cast %58 : vector<8xf32> to vector<8x1xf32>
    %60 = tpu.reciprocal %59 {approx = true} : vector<8x1xf32> -> vector<8x1xf32>
    %61 = vector.broadcast %60 : vector<8x1xf32> to vector<8x8xf32>
    %62 = arith.mulf %57, %61 : vector<8x8xf32>
    %c0_24 = arith.constant 0 : index
    %c2 = arith.constant 2 : index
    %c0_25 = arith.constant 0 : index
    %c0_26 = arith.constant 0 : index
    %63 = vector.load %arg8[%c0_24, %c2, %c0_25, %c0_26] : memref<1x4x8x8xf32, #tpu.memory_space<vmem>>, vector<1x1x8x8xf32>
    %64 = vector.shape_cast %63 : vector<1x1x8x8xf32> to vector<8x8xf32>
    %65 = vector.shape_cast %62 : vector<8x8xf32> to vector<1x1x8x8xf32>
    tpu.vector_store %arg8[%c0_24, %c2, %c0_25, %c0_26], %65 {strides = array<i32>} : memref<1x4x8x8xf32, #tpu.memory_space<vmem>>, vector<1x1x8x8xf32>,
    %66 = arith.truncf %62 : vector<8x8xf32> to vector<8x8xbf16>
    %cst_27 = arith.constant dense<0.000000e+00> : vector<8x8xf32>
    %67 = tpu.matmul %66, %51, %cst_27 {dimension_numbers = #tpu.dot_dimension_numbers<[1], [0], [0], [1], [0, 0, 1, 1], [], []>} : vector<8x8xbf16>, vector<8x8xbf16>, vector<8x8xf32> -> vector<8x8xf32>
    %68 = vector.extract_strided_slice %9 {offsets = [0, 24], sizes = [8, 8], strides = [1, 1]} : vector<8x32xbf16> to vector<8x8xbf16>
    %69 = vector.extract_strided_slice %10 {offsets = [0, 24], sizes = [8, 8], strides = [1, 1]} : vector<8x64xbf16> to vector<8x8xbf16>
    %70 = vector.extract_strided_slice %10 {offsets = [0, 56], sizes = [8, 8], strides = [1, 1]} : vector<8x64xbf16> to vector<8x8xbf16>
    %cst_28 = arith.constant dense<0.000000e+00> : vector<8x8xf32>
    %71 = tpu.matmul %68, %69, %cst_28 {dimension_numbers = #tpu.dot_dimension_numbers<[1], [1], [0], [0], [0, 0, 1, 0], [], []>} : vector<8x8xbf16>, vector<8x8xbf16>, vector<8x8xf32> -> vector<8x8xf32>
    %cst_29 = arith.constant dense<0xFF800000> : vector<8xf32>
    %72 = vector.multi_reduction <maximumf>, %71, %cst_29 [1] : vector<8x8xf32> to vector<8xf32>
    %73 = vector.shape_cast %72 : vector<8xf32> to vector<8x1xf32>
    %74 = vector.broadcast %73 : vector<8x1xf32> to vector<8x8xf32>
    %75 = arith.subf %71, %74 : vector<8x8xf32>
    %76 = math.exp %75 : vector<8x8xf32>
    %cst_30 = arith.constant dense<0.000000e+00> : vector<8xf32>
    %77 = vector.multi_reduction <add>, %76, %cst_30 [1] : vector<8x8xf32> to vector<8xf32>
    %78 = vector.shape_cast %77 : vector<8xf32> to vector<8x1xf32>
    %79 = tpu.reciprocal %78 {approx = true} : vector<8x1xf32> -> vector<8x1xf32>
    %80 = vector.broadcast %79 : vector<8x1xf32> to vector<8x8xf32>
    %81 = arith.mulf %76, %80 : vector<8x8xf32>
    %c0_31 = arith.constant 0 : index
    %c3 = arith.constant 3 : index
    %c0_32 = arith.constant 0 : index
    %c0_33 = arith.constant 0 : index
    %82 = vector.load %arg8[%c0_31, %c3, %c0_32, %c0_33] : memref<1x4x8x8xf32, #tpu.memory_space<vmem>>, vector<1x1x8x8xf32>
    %83 = vector.shape_cast %82 : vector<1x1x8x8xf32> to vector<8x8xf32>
    %84 = vector.shape_cast %81 : vector<8x8xf32> to vector<1x1x8x8xf32>
    tpu.vector_store %arg8[%c0_31, %c3, %c0_32, %c0_33], %84 {strides = array<i32>} : memref<1x4x8x8xf32, #tpu.memory_space<vmem>>, vector<1x1x8x8xf32>,
    %85 = arith.truncf %81 : vector<8x8xf32> to vector<8x8xbf16>
    %cst_34 = arith.constant dense<0.000000e+00> : vector<8x8xf32>
    %86 = tpu.matmul %85, %70, %cst_34 {dimension_numbers = #tpu.dot_dimension_numbers<[1], [0], [0], [1], [0, 0, 1, 1], [], []>} : vector<8x8xbf16>, vector<8x8xbf16>, vector<8x8xf32> -> vector<8x8xf32>
    %87 = tpu.concatenate %29, %48, %67, %86 in 1 : vector<8x8xf32>, vector<8x8xf32>, vector<8x8xf32>, vector<8x8xf32> -> vector<8x32xf32>
    %88 = arith.truncf %87 : vector<8x32xf32> to vector<8x32xbf16>
    %c0_35 = arith.constant 0 : index
    %c0_36 = arith.constant 0 : index
    %89 = vector.load %arg5[%c0_35, %c0_36] : memref<32x32xbf16, #tpu.memory_space<vmem>>, vector<32x32xbf16>
    %cst_37 = arith.constant dense<0.000000e+00> : vector<8x32xf32>
    %90 = tpu.matmul %88, %89, %cst_37 {dimension_numbers = #tpu.dot_dimension_numbers<[1], [0], [0], [1], [0, 0, 1, 1], [], []>} : vector<8x32xbf16>, vector<32x32xbf16>, vector<8x32xf32> -> vector<8x32xf32>
    %c0_38 = arith.constant 0 : index
    %c0_39 = arith.constant 0 : index
    %91 = vector.load %arg6[%c0_38, %c0_39] : memref<1x32xf32, #tpu.memory_space<vmem>>, vector<1x32xf32>
    %92 = vector.broadcast %91 : vector<1x32xf32> to vector<8x32xf32>
    %93 = arith.addf %90, %92 : vector<8x32xf32>
    %c0_40 = arith.constant 0 : index
    %c0_41 = arith.constant 0 : index
    %c0_42 = arith.constant 0 : index
    %94 = vector.load %arg7[%c0_40, %c0_41, %c0_42] : memref<1x8x32xf32, #tpu.memory_space<vmem>>, vector<1x8x32xf32>
    %95 = vector.shape_cast %94 : vector<1x8x32xf32> to vector<8x32xf32>
    %96 = vector.shape_cast %93 : vector<8x32xf32> to vector<1x8x32xf32>
    tpu.vector_store %arg7[%c0_40, %c0_41, %c0_42], %96 {strides = array<i32>} : memref<1x8x32xf32, #tpu.memory_space<vmem>>, vector<1x8x32xf32>,
    return
  }
  func.func @transform_0(%arg0: i32, %arg1: i32) -> (i32, i32, i32) {
    %c0_i32 = arith.constant 0 : i32
    %c0_i32_0 = arith.constant 0 : i32
    %c0_i32_1 = arith.constant 0 : i32
    return %arg0, %c0_i32, %c0_i32_0 : i32, i32, i32
  }
  func.func @transform_1(%arg0: i32, %arg1: i32) -> (i32, i32) {
    %c0_i32 = arith.constant 0 : i32
    %c0_i32_0 = arith.constant 0 : i32
    %c0_i32_1 = arith.constant 0 : i32
    return %c0_i32, %c0_i32_0 : i32, i32
  }
  func.func @transform_2(%arg0: i32, %arg1: i32) -> (i32, i32) {
    %c0_i32 = arith.constant 0 : i32
    %c0_i32_0 = arith.constant 0 : i32
    %c0_i32_1 = arith.constant 0 : i32
    return %c0_i32, %c0_i32_0 : i32, i32
  }
  func.func @transform_3(%arg0: i32, %arg1: i32) -> (i32, i32) {
    %c0_i32 = arith.constant 0 : i32
    %c0_i32_0 = arith.constant 0 : i32
    %c0_i32_1 = arith.constant 0 : i32
    return %c0_i32, %c0_i32_0 : i32, i32
  }
  func.func @transform_4(%arg0: i32, %arg1: i32) -> (i32, i32) {
    %c0_i32 = arith.constant 0 : i32
    %c0_i32_0 = arith.constant 0 : i32
    %c0_i32_1 = arith.constant 0 : i32
    return %c0_i32, %c0_i32_0 : i32, i32
  }
  func.func @transform_5(%arg0: i32, %arg1: i32) -> (i32, i32, i32) {
    %c0_i32 = arith.constant 0 : i32
    %c0_i32_0 = arith.constant 0 : i32
    return %arg0, %arg1, %c0_i32 : i32, i32, i32
  }
  func.func @transform_6(%arg0: i32, %arg1: i32) -> (i32, i32, i32, i32) {
    %c0_i32 = arith.constant 0 : i32
    %c0_i32_0 = arith.constant 0 : i32
    %c0_i32_1 = arith.constant 0 : i32
    return %arg0, %c0_i32, %arg1, %c0_i32_0 : i32, i32, i32, i32
  }
}

</mosaic_0001>

<llo_original>
// kernel: tpu_custom_call.1
$region0: #{tpu_custom_call.1}
  #allocation0 [shape = 'u32[]', space=smem, size = 0x4, offset = 0x4, fixed_abs, tag = 'smem constant byte address 0x4 - core index']
  #allocation1 [shape = 'u32[144,128]{1,0:T(1,128)}', space=vmem, size = 0x12000, scoped, tag = 'internal scratch']
  %s0 = inlined_call_operand.hbm [shape: bf16[2,8,32], index: 0, kind: input, shape index: {}]
  %s1 = inlined_call_operand.hbm [shape: bf16[32,96], index: 1, kind: input, shape index: {}]
  %s2 = inlined_call_operand.hbm [shape: f32[1,96], index: 2, kind: input, shape index: {}]
  %s3 = inlined_call_operand.hbm [shape: bf16[32,32], index: 3, kind: input, shape index: {}]
  %s4 = inlined_call_operand.hbm [shape: f32[1,32], index: 4, kind: input, shape index: {}]
  %s5 = inlined_call_operand.hbm [shape: f32[2,8,32], index: 5, kind: output, shape index: {0}]
  %s6 = inlined_call_operand.hbm [shape: f32[2,4,8,8], index: 6, kind: output, shape index: {1}]
  %7 = xla_tuple %s5, %s6
  %s8 = sld [smem:[#allocation0]]
  $region81: #{tpu_custom_call.1} parent=0
    _
  %s10 = ssub.s32 1, %s8
  %s11 = scalar_select 0, %s10, %s8
  $region1: #{tpu_custom_call.1} parent=0
    #allocation2 [shape = 'u8[4096]{0}', space=vmem, size = 0x1000, scoped, tag = 'input window, operand 0']
    #allocation3 [shape = 's32[2]{0}', space=sflag, size = 0x8, scoped, tag = 'scoped memory for tpu_custom_call.1']
    #allocation4 [shape = 's32[2]{0}', space=sflag, size = 0x8, scoped, tag = 'scoped memory for tpu_custom_call.1']
    #allocation5 [shape = 'u8[8192]{0}', space=vmem, size = 0x2000, scoped, tag = 'input window, operand 1, single buffered']
    #allocation6 [shape = 's32[1]{0}', space=sflag, size = 0x4, scoped, tag = 'scoped memory for tpu_custom_call.1']
    #allocation7 [shape = 'u8[512]{0}', space=vmem, size = 0x400, scoped, tag = 'input window, operand 2, single buffered']
    #allocation8 [shape = 'u8[8192]{0}', space=vmem, size = 0x2000, scoped, tag = 'input window, operand 3, single buffered']
    #allocation9 [shape = 's32[1]{0}', space=sflag, size = 0x4, scoped, tag = 'scoped memory for tpu_custom_call.1']
    #allocation10 [shape = 'u8[512]{0}', space=vmem, size = 0x400, scoped, tag = 'input window, operand 4, single buffered']
    #allocation11 [shape = 'u8[8192]{0}', space=vmem, size = 0x2000, scoped, tag = 'output window, operand 0']
    #allocation12 [shape = 'u8[32768]{0}', space=vmem, size = 0x8000, scoped, tag = 'output window, operand 1']
    #allocation13 [shape = 's32[2]{0}', space=sflag, size = 0x8, scoped, tag = 'scoped memory for tpu_custom_call.1']
    %12 = vsyncpa [#allocation3], 0
    %s13 = scalar_lea.sflag [#allocation3], 1
    %14 = vsyncpa %s13, 0
    %15 = vsyncpa [#allocation6], 0
    %16 = vsyncpa [#allocation9], 0
    %17 = vsyncpa [#allocation4], 0
    %s18 = scalar_lea.sflag [#allocation4], 1
    %19 = vsyncpa %s18, 0
    %20 = vsyncpa [#allocation13], 0
    %s21 = scalar_lea.sflag [#allocation13], 1
    %22 = vsyncpa %s21, 0
    loop: start=0, step=1, limit=4
    $region2: #{tpu_custom_call.1} parent=1 // loop_pre_header
      _
    $region3: #{tpu_custom_call.1} parent=1 // loop_header
      %s24 = sphi 0, %s28
      %p25 = scmp.ge.s32.totalorder %s24, 4
      %s31 = sphi 0, %s43
      %s32 = sphi 0, %s39
      %s33 = sphi 0, %s31
      %s34 = sphi 0, %s32
      %s35 = sphi 0, %s33
      %s36 = sphi 0, %s34
      %s46 = sphi 0, %s48
      %s49 = sphi 0, %s46
      %s50 = sphi 0, %s49
      %s66 = sphi 0, %s50
      %s70 = sphi 0, %s70
      %s72 = sphi 0, %s70
      %s73 = sphi 0, %s72
      %s87 = sphi 0, %s73
      %s91 = sphi 0, %s91
      %s93 = sphi 0, %s91
      %s94 = sphi 0, %s93
      %s108 = sphi 0, %s94
      %s112 = sphi 0, %s112
      %s114 = sphi 0, %s112
      %s115 = sphi 0, %s114
      %s129 = sphi 0, %s115
      %s133 = sphi 0, %s133
      %s135 = sphi 0, %s133
      %s136 = sphi 0, %s135
      %s150 = sphi 0, %s136
      %s158 = sphi 0, %s160
      %s161 = sphi 0, %s158
      %s162 = sphi 0, %s161
      %s178 = sphi 0, %s162
      %s186 = sphi 0, %s188
      %s189 = sphi 0, %s186
      %s190 = sphi 0, %s189
      %s206 = sphi 0, %s190
    $region4: #{tpu_custom_call.1} parent=1 // loop_header_branch
      %27 = sbr.rel (%p25) target = $region8
    $region5: #{tpu_custom_call.1} parent=1 // loop_body
      %s29 = ssub.s32 %s24, 1
      %s30 = ssub.s32 %s24, 2
      %s37 = sadd.s32 1, %s32
      %p38 = scmp.ge.s32.totalorder %s37, 1
      %s39 = scalar_select %p38, 0, %s37
      %s40 = sadd.s32 1, %s31
      %s41 = scalar_select %p38, %s40, %s31
      %p42 = scmp.ge.s32.totalorder %s41, 2
      %s43 = scalar_select %p42, 0, %s41
      %s44 = ssub.s32 %s31, %s43
      %p45 = scmp.eq.s32.totalorder %s44, 0
      %s47 = sadd.s32 %s46, 1
      %s48 = scalar_select %p45, %s46, %s47
      %p51 = pneg %p45
      %p52 = scmp.eq.s32.totalorder %s24, 1
      %p53 = por %p51, %p52
      %p54 = scmp.ne.s32.totalorder %s46, %s49
      %p55 = scmp.eq.s32.totalorder %s24, 0
      %p56 = por %p54, %p55
      %p57 = scmp.ne.s32.totalorder %s46, %s49
      %p58 = scmp.eq.s32.totalorder %s29, 1
      %p59 = por %p57, %p58
      %p60 = scmp.ne.s32.totalorder %s49, %s50
      %p61 = scmp.eq.s32.totalorder %s29, 0
      %p62 = por %p60, %p61
      %p63 = scmp.ne.s32.totalorder %s49, %s50
      %p64 = scmp.eq.s32.totalorder %s30, 1
      %p65 = por %p63, %p64
      %p67 = scmp.ne.s32.totalorder %s50, %s66
      %p68 = scmp.eq.s32.totalorder %s30, 0
      %p69 = por %p67, %p68
      %s71 = sadd.s32 %s70, 1
      %p74 = scmp.eq.s32.totalorder %s24, 1
      %p75 = scmp.ne.s32.totalorder %s70, %s72
      %p76 = scmp.eq.s32.totalorder %s24, 0
      %p77 = por %p75, %p76
      %p78 = scmp.ne.s32.totalorder %s70, %s72
      %p79 = scmp.eq.s32.totalorder %s29, 1
      %p80 = por %p78, %p79
      %p81 = scmp.ne.s32.totalorder %s72, %s73
      %p82 = scmp.eq.s32.totalorder %s29, 0
      %p83 = por %p81, %p82
      %p84 = scmp.ne.s32.totalorder %s72, %s73
      %p85 = scmp.eq.s32.totalorder %s30, 1
      %p86 = por %p84, %p85
      %p88 = scmp.ne.s32.totalorder %s73, %s87
      %p89 = scmp.eq.s32.totalorder %s30, 0
      %p90 = por %p88, %p89
      %s92 = sadd.s32 %s91, 1
      %p95 = scmp.eq.s32.totalorder %s24, 1
      %p96 = scmp.ne.s32.totalorder %s91, %s93
      %p97 = scmp.eq.s32.totalorder %s24, 0
      %p98 = por %p96, %p97
      %p99 = scmp.ne.s32.totalorder %s91, %s93
      %p100 = scmp.eq.s32.totalorder %s29, 1
      %p101 = por %p99, %p100
      %p102 = scmp.ne.s32.totalorder %s93, %s94
      %p103 = scmp.eq.s32.totalorder %s29, 0
      %p104 = por %p102, %p103
      %p105 = scmp.ne.s32.totalorder %s93, %s94
      %p106 = scmp.eq.s32.totalorder %s30, 1
      %p107 = por %p105, %p106
      %p109 = scmp.ne.s32.totalorder %s94, %s108
      %p110 = scmp.eq.s32.totalorder %s30, 0
      %p111 = por %p109, %p110
      %s113 = sadd.s32 %s112, 1
      %p116 = scmp.eq.s32.totalorder %s24, 1
      %p117 = scmp.ne.s32.totalorder %s112, %s114
      %p118 = scmp.eq.s32.totalorder %s24, 0
      %p119 = por %p117, %p118
      %p120 = scmp.ne.s32.totalorder %s112, %s114
      %p121 = scmp.eq.s32.totalorder %s29, 1
      %p122 = por %p120, %p121
      %p123 = scmp.ne.s32.totalorder %s114, %s115
      %p124 = scmp.eq.s32.totalorder %s29, 0
      %p125 = por %p123, %p124
      %p126 = scmp.ne.s32.totalorder %s114, %s115
      %p127 = scmp.eq.s32.totalorder %s30, 1
      %p128 = por %p126, %p127
      %p130 = scmp.ne.s32.totalorder %s115, %s129
      %p131 = scmp.eq.s32.totalorder %s30, 0
      %p132 = por %p130, %p131
      %s134 = sadd.s32 %s133, 1
      %p137 = scmp.eq.s32.totalorder %s24, 1
      %p138 = scmp.ne.s32.totalorder %s133, %s135
      %p139 = scmp.eq.s32.totalorder %s24, 0
      %p140 = por %p138, %p139
      %p141 = scmp.ne.s32.totalorder %s133, %s135
      %p142 = scmp.eq.s32.totalorder %s29, 1
      %p143 = por %p141, %p142
      %p144 = scmp.ne.s32.totalorder %s135, %s136
      %p145 = scmp.eq.s32.totalorder %s29, 0
      %p146 = por %p144, %p145
      %p147 = scmp.ne.s32.totalorder %s135, %s136
      %p148 = scmp.eq.s32.totalorder %s30, 1
      %p149 = por %p147, %p148
      %p151 = scmp.ne.s32.totalorder %s136, %s150
      %p152 = scmp.eq.s32.totalorder %s30, 0
      %p153 = por %p151, %p152
      %s154 = ssub.s32 %s31, %s43
      %s155 = ssub.s32 %s32, %s39
      %s156 = sor.u32 %s154, %s155
      %p157 = scmp.eq.s32.totalorder %s156, 0
      %s159 = sadd.s32 %s158, 1
      %s160 = scalar_select %p157, %s158, %s159
      %p163 = pneg %p157
      %p164 = scmp.eq.s32.totalorder %s24, 1
      %p165 = por %p163, %p164
      %p166 = scmp.ne.s32.totalorder %s158, %s161
      %p167 = scmp.eq.s32.totalorder %s24, 0
      %p168 = por %p166, %p167
      %p169 = scmp.ne.s32.totalorder %s158, %s161
      %p170 = scmp.eq.s32.totalorder %s29, 1
      %p171 = por %p169, %p170
      %p172 = scmp.ne.s32.totalorder %s161, %s162
      %p173 = scmp.eq.s32.totalorder %s29, 0
      %p174 = por %p172, %p173
      %p175 = scmp.ne.s32.totalorder %s161, %s162
      %p176 = scmp.eq.s32.totalorder %s30, 1
      %p177 = por %p175, %p176
      %p179 = scmp.ne.s32.totalorder %s162, %s178
      %p180 = scmp.eq.s32.totalorder %s30, 0
      %p181 = por %p179, %p180
      %s182 = ssub.s32 %s31, %s43
      %s183 = ssub.s32 %s32, %s39
      %s184 = sor.u32 %s182, %s183
      %p185 = scmp.eq.s32.totalorder %s184, 0
      %s187 = sadd.s32 %s186, 1
      %s188 = scalar_select %p185, %s186, %s187
      %p191 = pneg %p185
      %p192 = scmp.eq.s32.totalorder %s24, 1
      %p193 = por %p191, %p192
      %p194 = scmp.ne.s32.totalorder %s186, %s189
      %p195 = scmp.eq.s32.totalorder %s24, 0
      %p196 = por %p194, %p195
      %p197 = scmp.ne.s32.totalorder %s186, %s189
      %p198 = scmp.eq.s32.totalorder %s29, 1
      %p199 = por %p197, %p198
      %p200 = scmp.ne.s32.totalorder %s189, %s190
      %p201 = scmp.eq.s32.totalorder %s29, 0
      %p202 = por %p200, %p201
      %p203 = scmp.ne.s32.totalorder %s189, %s190
      %p204 = scmp.eq.s32.totalorder %s30, 1
      %p205 = por %p203, %p204
      %p207 = scmp.ne.s32.totalorder %s190, %s206
      %p208 = scmp.eq.s32.totalorder %s30, 0
      %p209 = por %p207, %p208
      %p210 = scmp.le.s32.totalorder 1, %s24
      %p211 = scmp.lt.s32.totalorder %s24, 3
      %p212 = pnand %p210, %p211
      %p213 = pneg %p212
      // Predicated region
      $region9: #{tpu_custom_call.1} parent=5 // pred_check
        _
      $region10: #{tpu_custom_call.1} parent=5 // pred_check_branch
        %215 = sbr.rel (%p212) target = $region12
      $region11: #{tpu_custom_call.1} parent=5 // pred_region
        %s216 = ssub.s32 %s24, 1
        // Predicated region
        $region13: #{tpu_custom_call.1} parent=11 // pred_check
          %p217 = pneg %p83
        $region14: #{tpu_custom_call.1} parent=11 // pred_check_branch
          %219 = sbr.rel (%p217) target = $region16
        $region15: #{tpu_custom_call.1} parent=11 // pred_region
          %s221 = ssub.s32 256, 256
          %222 = vsyncadd [#allocation6], %s221
          %s223 = sshll.u32 [#allocation5], 4
          %s224 = int_to_ptr.vmem [resolvable:$true] %s223
          %229 = dma.hbm_to_vmem [thread:$0]  %s1, 256, %s224, [#allocation6], 64, 64, 4
        $region16: #{tpu_custom_call.1} parent=11 // pred_fallthru
          _
        // Predicated region
        $region17: #{tpu_custom_call.1} parent=11 // pred_check
          %p230 = pneg %p104
        $region18: #{tpu_custom_call.1} parent=11 // pred_check_branch
          %232 = sbr.rel (%p230) target = $region20
        $region19: #{tpu_custom_call.1} parent=11 // pred_region
          %s234 = ssub.s32 16, 16
          %235 = vsyncadd [#allocation6], %s234
          %s237 = sshll.u32 [#allocation7], 4
          %s238 = int_to_ptr.vmem [resolvable:$true] %s237
          %240 = dma.hbm_to_vmem [thread:$0]  %s2, 16, %s238, [#allocation6]
        $region20: #{tpu_custom_call.1} parent=11 // pred_fallthru
          _
        // Predicated region
        $region21: #{tpu_custom_call.1} parent=11 // pred_check
          %p241 = pneg %p125
        $region22: #{tpu_custom_call.1} parent=11 // pred_check_branch
          %243 = sbr.rel (%p241) target = $region24
        $region23: #{tpu_custom_call.1} parent=11 // pred_region
          %s245 = ssub.s32 256, 256
          %246 = vsyncadd [#allocation9], %s245
          %s247 = sshll.u32 [#allocation8], 4
          %s248 = int_to_ptr.vmem [resolvable:$true] %s247
          %253 = dma.hbm_to_vmem [thread:$0]  %s3, 256, %s248, [#allocation9], 64, 64, 4
        $region24: #{tpu_custom_call.1} parent=11 // pred_fallthru
          _
        // Predicated region
        $region25: #{tpu_custom_call.1} parent=11 // pred_check
          %p254 = pneg %p146
        $region26: #{tpu_custom_call.1} parent=11 // pred_check_branch
          %256 = sbr.rel (%p254) target = $region28
        $region27: #{tpu_custom_call.1} parent=11 // pred_region
          %s258 = ssub.s32 16, 16
          %259 = vsyncadd [#allocation9], %s258
          %s261 = sshll.u32 [#allocation10], 4
          %s262 = int_to_ptr.vmem [resolvable:$true] %s261
          %264 = dma.hbm_to_vmem [thread:$0]  %s4, 16, %s262, [#allocation9]
        $region28: #{tpu_custom_call.1} parent=11 // pred_fallthru
          _
      $region12: #{tpu_custom_call.1} parent=5 // pred_fallthru
        _
      %p265 = scmp.lt.s32.totalorder %s24, 2
      // Predicated region
      $region29: #{tpu_custom_call.1} parent=5 // pred_check
        %p266 = pneg %p265
      $region30: #{tpu_custom_call.1} parent=5 // pred_check_branch
        %268 = sbr.rel (%p266) target = $region32
      $region31: #{tpu_custom_call.1} parent=5 // pred_region
        // Predicated region
        $region33: #{tpu_custom_call.1} parent=31 // pred_check
          %p269 = pneg %p56
        $region34: #{tpu_custom_call.1} parent=31 // pred_check_branch
          %271 = sbr.rel (%p269) target = $region36
        $region35: #{tpu_custom_call.1} parent=31 // pred_region
          %s272 = sand.u32 %s46, 1
          %s273 = scalar_lea.sflag [#allocation3], %s272
          %s274 = sand.u32 %s46, 1
          %s275 = smul.addr %s274, 4
          %s276 = scalar_lea.vmem [#allocation2], %s275
          %s278 = ssub.s32 64, 64
          %279 = vsyncadd %s273, %s278
          %s280 = smul.addr %s31, 64
          %s281 = scalar_lea.hbm %s0, %s280
          %s283 = sshll.u32 %s276, 4
          %s284 = int_to_ptr.vmem [resolvable:$true] %s283
          %286 = dma.hbm_to_vmem [thread:$0]  %s281, 64, %s284, %s273
        $region36: #{tpu_custom_call.1} parent=31 // pred_fallthru
          _
      $region32: #{tpu_custom_call.1} parent=5 // pred_fallthru
        _
      %p287 = scmp.le.s32.totalorder 1, %s24
      %p288 = scmp.lt.s32.totalorder %s24, 3
      %p289 = pnand %p287, %p288
      %p290 = pneg %p289
      // Predicated region
      $region37: #{tpu_custom_call.1} parent=5 // pred_check
        _
      $region38: #{tpu_custom_call.1} parent=5 // pred_check_branch
        %292 = sbr.rel (%p289) target = $region40
      $region39: #{tpu_custom_call.1} parent=5 // pred_region
        %s293 = ssub.s32 %s24, 1
        %s294 = sand.u32 %s49, 1
        %s295 = scalar_lea.sflag [#allocation3], %s294
        %s296 = sand.u32 %s49, 1
        %s297 = smul.addr %s296, 4
        %s298 = scalar_lea.vmem [#allocation2], %s297
        // Predicated region
        $region41: #{tpu_custom_call.1} parent=39 // pred_check
          %p299 = pneg %p62
        $region42: #{tpu_custom_call.1} parent=39 // pred_check_branch
          %301 = sbr.rel (%p299) target = $region44
        $region43: #{tpu_custom_call.1} parent=39 // pred_region
          %302 = dma.done %s295, 64
        $region44: #{tpu_custom_call.1} parent=39 // pred_fallthru
          _
        // Predicated region
        $region45: #{tpu_custom_call.1} parent=39 // pred_check
          %p303 = pneg %p83
        $region46: #{tpu_custom_call.1} parent=39 // pred_check_branch
          %305 = sbr.rel (%p303) target = $region48
        $region47: #{tpu_custom_call.1} parent=39 // pred_region
          %306 = dma.done [#allocation6], 256
        $region48: #{tpu_custom_call.1} parent=39 // pred_fallthru
          _
        // Predicated region
        $region49: #{tpu_custom_call.1} parent=39 // pred_check
          %p307 = pneg %p104
        $region50: #{tpu_custom_call.1} parent=39 // pred_check_branch
          %309 = sbr.rel (%p307) target = $region52
        $region51: #{tpu_custom_call.1} parent=39 // pred_region
          %310 = dma.done [#allocation6], 16
        $region52: #{tpu_custom_call.1} parent=39 // pred_fallthru
          _
        // Predicated region
        $region53: #{tpu_custom_call.1} parent=39 // pred_check
          %p311 = pneg %p125
        $region54: #{tpu_custom_call.1} parent=39 // pred_check_branch
          %313 = sbr.rel (%p311) target = $region56
        $region55: #{tpu_custom_call.1} parent=39 // pred_region
          %314 = dma.done [#allocation9], 256
        $region56: #{tpu_custom_call.1} parent=39 // pred_fallthru
          _
        // Predicated region
        $region57: #{tpu_custom_call.1} parent=39 // pred_check
          %p315 = pneg %p146
        $region58: #{tpu_custom_call.1} parent=39 // pred_check_branch
          %317 = sbr.rel (%p315) target = $region60
        $region59: #{tpu_custom_call.1} parent=39 // pred_region
          %318 = dma.done [#allocation9], 16
        $region60: #{tpu_custom_call.1} parent=39 // pred_fallthru
          _
        %s319 = sand.u32 %s49, 1
        %s320 = scalar_lea.sflag [#allocation3], %s319
        %s321 = sand.u32 %s49, 1
        %s322 = smul.addr %s321, 4
        %s323 = scalar_lea.vmem [#allocation2], %s322
        %p324 = pneg %p62
        %p325 = pneg %p59
        %p326 = pneg %p83
        %p327 = pneg %p80
        %p328 = pneg %p104
        %p329 = pneg %p101
        %p330 = pneg %p125
        %p331 = pneg %p122
        %p332 = pneg %p146
        %p333 = pneg %p143
        %p334 = pneg %p174
        %p335 = pneg %p171
        %s336 = sand.u32 %s161, 1
        %s337 = scalar_lea.sflag [#allocation4], %s336
        %s338 = sand.u32 %s161, 1
        %s339 = smul.addr %s338, 8
        %s340 = scalar_lea.vmem [#allocation11], %s339
        %p341 = pneg %p202
        %p342 = pneg %p199
        %s343 = sand.u32 %s189, 1
        %s344 = scalar_lea.sflag [#allocation13], %s343
        %s345 = sand.u32 %s189, 1
        %s346 = smul.addr %s345, 32
        %s347 = scalar_lea.vmem [#allocation12], %s346
        %v349 = vld [vmem:[%s298] sm:$0xf]
        %v350 = vld [vmem:[#allocation5] sm:$0xf]
        %v351 = vld [vmem:[#allocation5 + $0x4] sm:$0xf]
        %v352 = vld [vmem:[#allocation5 + $0x8] sm:$0xf]
        %v353 = vld [vmem:[#allocation5 + $0xc] sm:$0xf]
        %v354 = vld [vmem:[#allocation7] sm:$0x1]
        %v356 = vlaneseq
        %v357 = vshrl.u32 %v356, 7
        %v358 = vsub.s32 0, %v357
        %v359 = vrot.slane %v354, %v358
        %v365 = vunpack.c.l.b16 %v350
        %v366 = vunpack.c.l.b16 %v351
        %v367 = vunpack.c.l.b16 %v352
        %v368 = vunpack.c.l.b16 %v353
        %v369 = vpack.c.b16 %v366, %v365
        %v370 = vpack.c.b16 %v368, %v367
        %vm373 = vcmask 261120
        %v375 = vsel %vm373, %v349, 0
        %377 = vmatprep.subr.bf16.mxu0 0
        %378 = vmatpush1.bf16.msra.mxu0 %v369
        %379 = vmatprep.subr.bf16.mxu0 0
        %380 = vmatpush1.bf16.msra.mxu0 %v370
        %381 = vmatprep.subr.bf16.mxu0 0
        %382 = vmatpush1.bf16.msra.mxu0 0
        %383 = vmatprep.subr.bf16.mxu0 0
        %384 = vmatpush1.bf16.msra.mxu0 0
        %385 = vmatprep.subr.bf16.mxu0 0
        %386 = vmatpush1.bf16.msra.mxu0 0
        %387 = vmatprep.subr.bf16.mxu0 0
        %388 = vmatpush1.bf16.msra.mxu0 0
        %389 = vmatprep.subr.bf16.mxu0 0
        %390 = vmatpush1.bf16.msra.mxu0 0
        %391 = vmatprep.subr.bf16.mxu0 0
        %392 = vmatpush1.bf16.msra.mxu0 0
        %393 = vmatprep.subr.bf16.mxu0 0
        %394 = vmatpush1.bf16.msra.mxu0 0
        %395 = vmatprep.subr.bf16.mxu0 0
        %396 = vmatpush1.bf16.msra.mxu0 0
        %397 = vmatprep.subr.bf16.mxu0 0
        %398 = vmatpush1.bf16.msra.mxu0 0
        %399 = vmatprep.subr.bf16.mxu0 0
        %400 = vmatpush1.bf16.msra.mxu0 0
        %401 = vmatprep.subr.bf16.mxu0 0
        %402 = vmatpush1.bf16.msra.mxu0 0
        %403 = vmatprep.subr.bf16.mxu0 0
        %404 = vmatpush1.bf16.msra.mxu0 0
        %405 = vmatprep.subr.bf16.mxu0 0
        %406 = vmatpush1.bf16.msra.mxu0 0
        %407 = vmatprep.subr.bf16.mxu0 0
        %408 = vmatpush1.bf16.msra.mxu0 0
        %409 = vmatprep.mubr.bf16.mxu0 0
        %410 = vmatmul.mubr.bf16.gmra.mrb[0].mxu0 %v375
        %v411 = vpop.f32.mrb[0].mxu0
        %v412 = vadd.f32 %v359, %v411
        %v413 = vpop.f32.mrb[0].mxu0
        %v414 = vpop.f32.mrb[0].mxu0
        %v415 = vpop.f32.mrb[0].mxu0
        %416 = vdwg.mxu0
        %v417 = vpack.c.bf16 %v412, %v412
        %419 = vrot.lane.b32.xlu0 %v417, 96
        %v420 = vpop.permute.xlu0 %419
        %vm421 = vcmask 64512
        %v423 = vsel %vm421, %v417, 0
        %v426 = vsel %vm421, %v420, 0
        %428 = vmatprep.subr.bf16.mxu0 0
        %429 = vmatpush1.bf16.xpose.msra.mxu0 %v426
        %430 = vmatprep.subr.bf16.mxu0 0
        %431 = vmatpush1.bf16.xpose.msra.mxu0 0
        %432 = vmatprep.subr.bf16.mxu0 0
        %433 = vmatpush1.bf16.xpose.msra.mxu0 0
        %434 = vmatprep.subr.bf16.mxu0 0
        %435 = vmatpush1.bf16.xpose.msra.mxu0 0
        %436 = vmatprep.subr.bf16.mxu0 0
        %437 = vmatpush1.bf16.xpose.msra.mxu0 0
        %438 = vmatprep.subr.bf16.mxu0 0
        %439 = vmatpush1.bf16.xpose.msra.mxu0 0
        %440 = vmatprep.subr.bf16.mxu0 0
        %441 = vmatpush1.bf16.xpose.msra.mxu0 0
        %442 = vmatprep.subr.bf16.mxu0 0
        %443 = vmatpush1.bf16.xpose.msra.mxu0 0
        %444 = vmatprep.subr.bf16.mxu0 0
        %445 = vmatpush1.bf16.xpose.msra.mxu0 0
        %446 = vmatprep.subr.bf16.mxu0 0
        %447 = vmatpush1.bf16.xpose.msra.mxu0 0
        %448 = vmatprep.subr.bf16.mxu0 0
        %449 = vmatpush1.bf16.xpose.msra.mxu0 0
        %450 = vmatprep.subr.bf16.mxu0 0
        %451 = vmatpush1.bf16.xpose.msra.mxu0 0
        %452 = vmatprep.subr.bf16.mxu0 0
        %453 = vmatpush1.bf16.xpose.msra.mxu0 0
        %454 = vmatprep.subr.bf16.mxu0 0
        %455 = vmatpush1.bf16.xpose.msra.mxu0 0
        %456 = vmatprep.subr.bf16.mxu0 0
        %457 = vmatpush1.bf16.xpose.msra.mxu0 0
        %458 = vmatprep.subr.bf16.mxu0 0
        %459 = vmatpush1.bf16.xpose.msra.mxu0 0
        %460 = vmatprep.mubr.bf16.mxu0 0
        %461 = vmatmul.mubr.bf16.gmra.mrb[0].mxu0 %v423
        %v462 = vpop.f32.mrb[0].mxu0
        %v463 = vadd.f32 0.0, %v462
        %v464 = vpop.f32.mrb[0].mxu0
        %v465 = vpop.f32.mrb[0].mxu0
        %v466 = vpop.f32.mrb[0].mxu0
        %467 = vdwg.mxu0
        %v468 = vsel %vm421, %v463, -inf
        %469 = vmax.xlane.f32.xlu0 %v468
        %v470 = vpop.xlane.xlu0 %469
        %v471 = vsub.f32 %v463, %v470
        %v472 = vmul.f32 %v471, 1.442695
        %v473 = vpow.pop %v472
        %v474 = vsel %vm421, %v473, 0.0
        %475 = vadd.xlane.f32.xlu0 %v474
        %v476 = vpop.xlane.xlu0 %475
        %v477 = vrcp.pop %v476
        %v478 = vmul.f32 %v473, %v477
        %479 = vst.msk [vmem:[%s347] sm:$0xff] %vm421, %v478
        %v480 = vpack.c.bf16 %v478, %v478
        %481 = vrot.lane.b32.xlu0 %v417, 64
        %v482 = vpop.permute.xlu0 %481
        %v484 = vsel %vm421, %v480, 0
        %vm486 = vcmask 1043456
        %v488 = vsel %vm486, %v482, 0
        %490 = vmatprep.subr.bf16.mxu0 0
        %491 = vmatpush1.bf16.msra.mxu0 %v488
        %492 = vmatprep.subr.bf16.mxu0 0
        %493 = vmatpush1.bf16.msra.mxu0 0
        %494 = vmatprep.subr.bf16.mxu0 0
        %495 = vmatpush1.bf16.msra.mxu0 0
        %496 = vmatprep.subr.bf16.mxu0 0
        %497 = vmatpush1.bf16.msra.mxu0 0
        %498 = vmatprep.subr.bf16.mxu0 0
        %499 = vmatpush1.bf16.msra.mxu0 0
        %500 = vmatprep.subr.bf16.mxu0 0
        %501 = vmatpush1.bf16.msra.mxu0 0
        %502 = vmatprep.subr.bf16.mxu0 0
        %503 = vmatpush1.bf16.msra.mxu0 0
        %504 = vmatprep.subr.bf16.mxu0 0
        %505 = vmatpush1.bf16.msra.mxu0 0
        %506 = vmatprep.subr.bf16.mxu0 0
        %507 = vmatpush1.bf16.msra.mxu0 0
        %508 = vmatprep.subr.bf16.mxu0 0
        %509 = vmatpush1.bf16.msra.mxu0 0
        %510 = vmatprep.subr.bf16.mxu0 0
        %511 = vmatpush1.bf16.msra.mxu0 0
        %512 = vmatprep.subr.bf16.mxu0 0
        %513 = vmatpush1.bf16.msra.mxu0 0
        %514 = vmatprep.subr.bf16.mxu0 0
        %515 = vmatpush1.bf16.msra.mxu0 0
        %516 = vmatprep.subr.bf16.mxu0 0
        %517 = vmatpush1.bf16.msra.mxu0 0
        %518 = vmatprep.subr.bf16.mxu0 0
        %519 = vmatpush1.bf16.msra.mxu0 0
        %520 = vmatprep.subr.bf16.mxu0 0
        %521 = vmatpush1.bf16.msra.mxu0 0
        %522 = vmatprep.mubr.bf16.mxu0 0
        %523 = vmatmul.mubr.bf16.gmra.mrb[0].mxu0 %v484
        %v524 = vpop.f32.mrb[0].mxu0
        %v525 = vadd.f32 0.0, %v524
        %v526 = vpop.f32.mrb[0].mxu0
        %v527 = vpop.f32.mrb[0].mxu0
        %v528 = vpop.f32.mrb[0].mxu0
        %529 = vdwg.mxu0
        %530 = vrot.lane.b32.xlu0 %v417, 120
        %v531 = vpop.permute.xlu0 %530
        %532 = vrot.lane.b32.xlu0 %v417, 88
        %v533 = vpop.permute.xlu0 %532
        %v535 = vsel %vm421, %v531, 0
        %v538 = vsel %vm421, %v533, 0
        %540 = vmatprep.subr.bf16.mxu0 0
        %541 = vmatpush1.bf16.xpose.msra.mxu0 %v538
        %542 = vmatprep.subr.bf16.mxu0 0
        %543 = vmatpush1.bf16.xpose.msra.mxu0 0
        %544 = vmatprep.subr.bf16.mxu0 0
        %545 = vmatpush1.bf16.xpose.msra.mxu0 0
        %546 = vmatprep.subr.bf16.mxu0 0
        %547 = vmatpush1.bf16.xpose.msra.mxu0 0
        %548 = vmatprep.subr.bf16.mxu0 0
        %549 = vmatpush1.bf16.xpose.msra.mxu0 0
        %550 = vmatprep.subr.bf16.mxu0 0
        %551 = vmatpush1.bf16.xpose.msra.mxu0 0
        %552 = vmatprep.subr.bf16.mxu0 0
        %553 = vmatpush1.bf16.xpose.msra.mxu0 0
        %554 = vmatprep.subr.bf16.mxu0 0
        %555 = vmatpush1.bf16.xpose.msra.mxu0 0
        %556 = vmatprep.subr.bf16.mxu0 0
        %557 = vmatpush1.bf16.xpose.msra.mxu0 0
        %558 = vmatprep.subr.bf16.mxu0 0
        %559 = vmatpush1.bf16.xpose.msra.mxu0 0
        %560 = vmatprep.subr.bf16.mxu0 0
        %561 = vmatpush1.bf16.xpose.msra.mxu0 0
        %562 = vmatprep.subr.bf16.mxu0 0
        %563 = vmatpush1.bf16.xpose.msra.mxu0 0
        %564 = vmatprep.subr.bf16.mxu0 0
        %565 = vmatpush1.bf16.xpose.msra.mxu0 0
        %566 = vmatprep.subr.bf16.mxu0 0
        %567 = vmatpush1.bf16.xpose.msra.mxu0 0
        %568 = vmatprep.subr.bf16.mxu0 0
        %569 = vmatpush1.bf16.xpose.msra.mxu0 0
        %570 = vmatprep.subr.bf16.mxu0 0
        %571 = vmatpush1.bf16.xpose.msra.mxu0 0
        %572 = vmatprep.mubr.bf16.mxu0 0
        %573 = vmatmul.mubr.bf16.gmra.mrb[0].mxu0 %v535
        %v574 = vpop.f32.mrb[0].mxu0
        %v575 = vadd.f32 0.0, %v574
        %v576 = vpop.f32.mrb[0].mxu0
        %v577 = vpop.f32.mrb[0].mxu0
        %v578 = vpop.f32.mrb[0].mxu0
        %579 = vdwg.mxu0
        %v580 = vsel %vm421, %v575, -inf
        %581 = vmax.xlane.f32.xlu0 %v580
        %v582 = vpop.xlane.xlu0 %581
        %v583 = vsub.f32 %v575, %v582
        %v584 = vmul.f32 %v583, 1.442695
        %v585 = vpow.pop %v584
        %v586 = vsel %vm421, %v585, 0.0
        %587 = vadd.xlane.f32.xlu0 %v586
        %v588 = vpop.xlane.xlu0 %587
        %v589 = vrcp.pop %v588
        %v590 = vmul.f32 %v585, %v589
        %s591 = scalar_lea.vmem %s347, 8 [#allocation12]
        %592 = vst.msk [vmem:[%s591] sm:$0xff] %vm421, %v590
        %v593 = vpack.c.bf16 %v590, %v590
        %594 = vrot.lane.b32.xlu0 %v417, 56
        %v595 = vpop.permute.xlu0 %594
        %v597 = vsel %vm421, %v593, 0
        %v600 = vsel %vm486, %v595, 0
        %602 = vmatprep.subr.bf16.mxu0 0
        %603 = vmatpush1.bf16.msra.mxu0 %v600
        %604 = vmatprep.subr.bf16.mxu0 0
        %605 = vmatpush1.bf16.msra.mxu0 0
        %606 = vmatprep.subr.bf16.mxu0 0
        %607 = vmatpush1.bf16.msra.mxu0 0
        %608 = vmatprep.subr.bf16.mxu0 0
        %609 = vmatpush1.bf16.msra.mxu0 0
        %610 = vmatprep.subr.bf16.mxu0 0
        %611 = vmatpush1.bf16.msra.mxu0 0
        %612 = vmatprep.subr.bf16.mxu0 0
        %613 = vmatpush1.bf16.msra.mxu0 0
        %614 = vmatprep.subr.bf16.mxu0 0
        %615 = vmatpush1.bf16.msra.mxu0 0
        %616 = vmatprep.subr.bf16.mxu0 0
        %617 = vmatpush1.bf16.msra.mxu0 0
        %618 = vmatprep.subr.bf16.mxu0 0
        %619 = vmatpush1.bf16.msra.mxu0 0
        %620 = vmatprep.subr.bf16.mxu0 0
        %621 = vmatpush1.bf16.msra.mxu0 0
        %622 = vmatprep.subr.bf16.mxu0 0
        %623 = vmatpush1.bf16.msra.mxu0 0
        %624 = vmatprep.subr.bf16.mxu0 0
        %625 = vmatpush1.bf16.msra.mxu0 0
        %626 = vmatprep.subr.bf16.mxu0 0
        %627 = vmatpush1.bf16.msra.mxu0 0
        %628 = vmatprep.subr.bf16.mxu0 0
        %629 = vmatpush1.bf16.msra.mxu0 0
        %630 = vmatprep.subr.bf16.mxu0 0
        %631 = vmatpush1.bf16.msra.mxu0 0
        %632 = vmatprep.subr.bf16.mxu0 0
        %633 = vmatpush1.bf16.msra.mxu0 0
        %634 = vmatprep.mubr.bf16.mxu0 0
        %635 = vmatmul.mubr.bf16.gmra.mrb[0].mxu0 %v597
        %v636 = vpop.f32.mrb[0].mxu0
        %v637 = vadd.f32 0.0, %v636
        %v638 = vpop.f32.mrb[0].mxu0
        %v639 = vpop.f32.mrb[0].mxu0
        %v640 = vpop.f32.mrb[0].mxu0
        %641 = vdwg.mxu0
        %642 = vrot.lane.b32.xlu0 %v417, 112
        %v643 = vpop.permute.xlu0 %642
        %644 = vrot.lane.b32.xlu0 %v417, 80
        %v645 = vpop.permute.xlu0 %644
        %v647 = vsel %vm421, %v643, 0
        %v650 = vsel %vm421, %v645, 0
        %652 = vmatprep.subr.bf16.mxu0 0
        %653 = vmatpush1.bf16.xpose.msra.mxu0 %v650
        %654 = vmatprep.subr.bf16.mxu0 0
        %655 = vmatpush1.bf16.xpose.msra.mxu0 0
        %656 = vmatprep.subr.bf16.mxu0 0
        %657 = vmatpush1.bf16.xpose.msra.mxu0 0
        %658 = vmatprep.subr.bf16.mxu0 0
        %659 = vmatpush1.bf16.xpose.msra.mxu0 0
        %660 = vmatprep.subr.bf16.mxu0 0
        %661 = vmatpush1.bf16.xpose.msra.mxu0 0
        %662 = vmatprep.subr.bf16.mxu0 0
        %663 = vmatpush1.bf16.xpose.msra.mxu0 0
        %664 = vmatprep.subr.bf16.mxu0 0
        %665 = vmatpush1.bf16.xpose.msra.mxu0 0
        %666 = vmatprep.subr.bf16.mxu0 0
        %667 = vmatpush1.bf16.xpose.msra.mxu0 0
        %668 = vmatprep.subr.bf16.mxu0 0
        %669 = vmatpush1.bf16.xpose.msra.mxu0 0
        %670 = vmatprep.subr.bf16.mxu0 0
        %671 = vmatpush1.bf16.xpose.msra.mxu0 0
        %672 = vmatprep.subr.bf16.mxu0 0
        %673 = vmatpush1.bf16.xpose.msra.mxu0 0
        %674 = vmatprep.subr.bf16.mxu0 0
        %675 = vmatpush1.bf16.xpose.msra.mxu0 0
        %676 = vmatprep.subr.bf16.mxu0 0
        %677 = vmatpush1.bf16.xpose.msra.mxu0 0
        %678 = vmatprep.subr.bf16.mxu0 0
        %679 = vmatpush1.bf16.xpose.msra.mxu0 0
        %680 = vmatprep.subr.bf16.mxu0 0
        %681 = vmatpush1.bf16.xpose.msra.mxu0 0
        %682 = vmatprep.subr.bf16.mxu0 0
        %683 = vmatpush1.bf16.xpose.msra.mxu0 0
        %684 = vmatprep.mubr.bf16.mxu0 0
        %685 = vmatmul.mubr.bf16.gmra.mrb[0].mxu0 %v647
        %v686 = vpop.f32.mrb[0].mxu0
        %v687 = vadd.f32 0.0, %v686
        %v688 = vpop.f32.mrb[0].mxu0
        %v689 = vpop.f32.mrb[0].mxu0
        %v690 = vpop.f32.mrb[0].mxu0
        %691 = vdwg.mxu0
        %v692 = vsel %vm421, %v687, -inf
        %693 = vmax.xlane.f32.xlu0 %v692
        %v694 = vpop.xlane.xlu0 %693
        %v695 = vsub.f32 %v687, %v694
        %v696 = vmul.f32 %v695, 1.442695
        %v697 = vpow.pop %v696
        %v698 = vsel %vm421, %v697, 0.0
        %699 = vadd.xlane.f32.xlu0 %v698
        %v700 = vpop.xlane.xlu0 %699
        %v701 = vrcp.pop %v700
        %v702 = vmul.f32 %v697, %v701
        %s703 = scalar_lea.vmem %s347, 16 [#allocation12]
        %704 = vst.msk [vmem:[%s703] sm:$0xff] %vm421, %v702
        %v705 = vpack.c.bf16 %v702, %v702
        %706 = vrot.lane.b32.xlu0 %v417, 48
        %v707 = vpop.permute.xlu0 %706
        %v709 = vsel %vm421, %v705, 0
        %v712 = vsel %vm486, %v707, 0
        %714 = vmatprep.subr.bf16.mxu0 0
        %715 = vmatpush1.bf16.msra.mxu0 %v712
        %716 = vmatprep.subr.bf16.mxu0 0
        %717 = vmatpush1.bf16.msra.mxu0 0
        %718 = vmatprep.subr.bf16.mxu0 0
        %719 = vmatpush1.bf16.msra.mxu0 0
        %720 = vmatprep.subr.bf16.mxu0 0
        %721 = vmatpush1.bf16.msra.mxu0 0
        %722 = vmatprep.subr.bf16.mxu0 0
        %723 = vmatpush1.bf16.msra.mxu0 0
        %724 = vmatprep.subr.bf16.mxu0 0
        %725 = vmatpush1.bf16.msra.mxu0 0
        %726 = vmatprep.subr.bf16.mxu0 0
        %727 = vmatpush1.bf16.msra.mxu0 0
        %728 = vmatprep.subr.bf16.mxu0 0
        %729 = vmatpush1.bf16.msra.mxu0 0
        %730 = vmatprep.subr.bf16.mxu0 0
        %731 = vmatpush1.bf16.msra.mxu0 0
        %732 = vmatprep.subr.bf16.mxu0 0
        %733 = vmatpush1.bf16.msra.mxu0 0
        %734 = vmatprep.subr.bf16.mxu0 0
        %735 = vmatpush1.bf16.msra.mxu0 0
        %736 = vmatprep.subr.bf16.mxu0 0
        %737 = vmatpush1.bf16.msra.mxu0 0
        %738 = vmatprep.subr.bf16.mxu0 0
        %739 = vmatpush1.bf16.msra.mxu0 0
        %740 = vmatprep.subr.bf16.mxu0 0
        %741 = vmatpush1.bf16.msra.mxu0 0
        %742 = vmatprep.subr.bf16.mxu0 0
        %743 = vmatpush1.bf16.msra.mxu0 0
        %744 = vmatprep.subr.bf16.mxu0 0
        %745 = vmatpush1.bf16.msra.mxu0 0
        %746 = vmatprep.mubr.bf16.mxu0 0
        %747 = vmatmul.mubr.bf16.gmra.mrb[0].mxu0 %v709
        %v748 = vpop.f32.mrb[0].mxu0
        %v749 = vadd.f32 0.0, %v748
        %v750 = vpop.f32.mrb[0].mxu0
        %v751 = vpop.f32.mrb[0].mxu0
        %v752 = vpop.f32.mrb[0].mxu0
        %753 = vdwg.mxu0
        %754 = vrot.lane.b32.xlu0 %v417, 104
        %v755 = vpop.permute.xlu0 %754
        %756 = vrot.lane.b32.xlu0 %v417, 72
        %v757 = vpop.permute.xlu0 %756
        %v759 = vsel %vm421, %v755, 0
        %v762 = vsel %vm421, %v757, 0
        %764 = vmatprep.subr.bf16.mxu0 0
        %765 = vmatpush1.bf16.xpose.msra.mxu0 %v762
        %766 = vmatprep.subr.bf16.mxu0 0
        %767 = vmatpush1.bf16.xpose.msra.mxu0 0
        %768 = vmatprep.subr.bf16.mxu0 0
        %769 = vmatpush1.bf16.xpose.msra.mxu0 0
        %770 = vmatprep.subr.bf16.mxu0 0
        %771 = vmatpush1.bf16.xpose.msra.mxu0 0
        %772 = vmatprep.subr.bf16.mxu0 0
        %773 = vmatpush1.bf16.xpose.msra.mxu0 0
        %774 = vmatprep.subr.bf16.mxu0 0
        %775 = vmatpush1.bf16.xpose.msra.mxu0 0
        %776 = vmatprep.subr.bf16.mxu0 0
        %777 = vmatpush1.bf16.xpose.msra.mxu0 0
        %778 = vmatprep.subr.bf16.mxu0 0
        %779 = vmatpush1.bf16.xpose.msra.mxu0 0
        %780 = vmatprep.subr.bf16.mxu0 0
        %781 = vmatpush1.bf16.xpose.msra.mxu0 0
        %782 = vmatprep.subr.bf16.mxu0 0
        %783 = vmatpush1.bf16.xpose.msra.mxu0 0
        %784 = vmatprep.subr.bf16.mxu0 0
        %785 = vmatpush1.bf16.xpose.msra.mxu0 0
        %786 = vmatprep.subr.bf16.mxu0 0
        %787 = vmatpush1.bf16.xpose.msra.mxu0 0
        %788 = vmatprep.subr.bf16.mxu0 0
        %789 = vmatpush1.bf16.xpose.msra.mxu0 0
        %790 = vmatprep.subr.bf16.mxu0 0
        %791 = vmatpush1.bf16.xpose.msra.mxu0 0
        %792 = vmatprep.subr.bf16.mxu0 0
        %793 = vmatpush1.bf16.xpose.msra.mxu0 0
        %794 = vmatprep.subr.bf16.mxu0 0
        %795 = vmatpush1.bf16.xpose.msra.mxu0 0
        %796 = vmatprep.mubr.bf16.mxu0 0
        %797 = vmatmul.mubr.bf16.gmra.mrb[0].mxu0 %v759
        %v798 = vpop.f32.mrb[0].mxu0
        %v799 = vadd.f32 0.0, %v798
        %v800 = vpop.f32.mrb[0].mxu0
        %v801 = vpop.f32.mrb[0].mxu0
        %v802 = vpop.f32.mrb[0].mxu0
        %803 = vdwg.mxu0
        %v804 = vsel %vm421, %v799, -inf
        %805 = vmax.xlane.f32.xlu0 %v804
        %v806 = vpop.xlane.xlu0 %805
        %v807 = vsub.f32 %v799, %v806
        %v808 = vmul.f32 %v807, 1.442695
        %v809 = vpow.pop %v808
        %v810 = vsel %vm421, %v809, 0.0
        %811 = vadd.xlane.f32.xlu0 %v810
        %v812 = vpop.xlane.xlu0 %811
        %v813 = vrcp.pop %v812
        %v814 = vmul.f32 %v809, %v813
        %s815 = scalar_lea.vmem %s347, 24 [#allocation12]
        %816 = vst.msk [vmem:[%s815] sm:$0xff] %vm421, %v814
        %v817 = vpack.c.bf16 %v814, %v814
        %818 = vrot.lane.b32.xlu0 %v417, 40
        %v819 = vpop.permute.xlu0 %818
        %v821 = vsel %vm421, %v817, 0
        %v824 = vsel %vm486, %v819, 0
        %826 = vmatprep.subr.bf16.mxu0 0
        %827 = vmatpush1.bf16.msra.mxu0 %v824
        %828 = vmatprep.subr.bf16.mxu0 0
        %829 = vmatpush1.bf16.msra.mxu0 0
        %830 = vmatprep.subr.bf16.mxu0 0
        %831 = vmatpush1.bf16.msra.mxu0 0
        %832 = vmatprep.subr.bf16.mxu0 0
        %833 = vmatpush1.bf16.msra.mxu0 0
        %834 = vmatprep.subr.bf16.mxu0 0
        %835 = vmatpush1.bf16.msra.mxu0 0
        %836 = vmatprep.subr.bf16.mxu0 0
        %837 = vmatpush1.bf16.msra.mxu0 0
        %838 = vmatprep.subr.bf16.mxu0 0
        %839 = vmatpush1.bf16.msra.mxu0 0
        %840 = vmatprep.subr.bf16.mxu0 0
        %841 = vmatpush1.bf16.msra.mxu0 0
        %842 = vmatprep.subr.bf16.mxu0 0
        %843 = vmatpush1.bf16.msra.mxu0 0
        %844 = vmatprep.subr.bf16.mxu0 0
        %845 = vmatpush1.bf16.msra.mxu0 0
        %846 = vmatprep.subr.bf16.mxu0 0
        %847 = vmatpush1.bf16.msra.mxu0 0
        %848 = vmatprep.subr.bf16.mxu0 0
        %849 = vmatpush1.bf16.msra.mxu0 0
        %850 = vmatprep.subr.bf16.mxu0 0
        %851 = vmatpush1.bf16.msra.mxu0 0
        %852 = vmatprep.subr.bf16.mxu0 0
        %853 = vmatpush1.bf16.msra.mxu0 0
        %854 = vmatprep.subr.bf16.mxu0 0
        %855 = vmatpush1.bf16.msra.mxu0 0
        %856 = vmatprep.subr.bf16.mxu0 0
        %857 = vmatpush1.bf16.msra.mxu0 0
        %858 = vmatprep.mubr.bf16.mxu0 0
        %859 = vmatmul.mubr.bf16.gmra.mrb[0].mxu0 %v821
        %v860 = vpop.f32.mrb[0].mxu0
        %v861 = vadd.f32 0.0, %v860
        %v862 = vpop.f32.mrb[0].mxu0
        %v863 = vpop.f32.mrb[0].mxu0
        %v864 = vpop.f32.mrb[0].mxu0
        %865 = vdwg.mxu0
        %867 = vrot.lane.b32.xlu0 %v637, 8
        %v868 = vpop.permute.xlu0 %867
        %871 = vrot.lane.b32.xlu0 %v749, 16
        %v872 = vpop.permute.xlu0 %871
        %875 = vrot.lane.b32.xlu0 %v861, 24
        %v876 = vpop.permute.xlu0 %875
        %v878 = vsel %vm421, %v525, %v868
        %vm879 = vcmask 130048
        %v880 = vsel %vm879, %v878, %v872
        %vm881 = vcmask 195584
        %v882 = vsel %vm881, %v880, %v876
        %v883 = vpack.c.bf16 %v882, %v882
        %v884 = vld [vmem:[#allocation8] sm:$0xf]
        %v885 = vld [vmem:[#allocation8 + $0x4] sm:$0xf]
        %v886 = vld [vmem:[#allocation8 + $0x8] sm:$0xf]
        %v887 = vld [vmem:[#allocation8 + $0xc] sm:$0xf]
        %v888 = vld [vmem:[#allocation10] sm:$0x1]
        %v890 = vlaneseq
        %v891 = vshrl.u32 %v890, 7
        %v892 = vsub.s32 0, %v891
        %v893 = vrot.slane %v888, %v892
        %v899 = vunpack.c.l.b16 %v884
        %v900 = vunpack.c.l.b16 %v885
        %v901 = vunpack.c.l.b16 %v886
        %v902 = vunpack.c.l.b16 %v887
        %v903 = vpack.c.b16 %v900, %v899
        %v904 = vpack.c.b16 %v902, %v901
        %v908 = vsel %vm373, %v883, 0
        %910 = vmatprep.subr.bf16.mxu0 0
        %911 = vmatpush1.bf16.msra.mxu0 %v903
        %912 = vmatprep.subr.bf16.mxu0 0
        %913 = vmatpush1.bf16.msra.mxu0 %v904
        %914 = vmatprep.subr.bf16.mxu0 0
        %915 = vmatpush1.bf16.msra.mxu0 0
        %916 = vmatprep.subr.bf16.mxu0 0
        %917 = vmatpush1.bf16.msra.mxu0 0
        %918 = vmatprep.subr.bf16.mxu0 0
        %919 = vmatpush1.bf16.msra.mxu0 0
        %920 = vmatprep.subr.bf16.mxu0 0
        %921 = vmatpush1.bf16.msra.mxu0 0
        %922 = vmatprep.subr.bf16.mxu0 0
        %923 = vmatpush1.bf16.msra.mxu0 0
        %924 = vmatprep.subr.bf16.mxu0 0
        %925 = vmatpush1.bf16.msra.mxu0 0
        %926 = vmatprep.subr.bf16.mxu0 0
        %927 = vmatpush1.bf16.msra.mxu0 0
        %928 = vmatprep.subr.bf16.mxu0 0
        %929 = vmatpush1.bf16.msra.mxu0 0
        %930 = vmatprep.subr.bf16.mxu0 0
        %931 = vmatpush1.bf16.msra.mxu0 0
        %932 = vmatprep.subr.bf16.mxu0 0
        %933 = vmatpush1.bf16.msra.mxu0 0
        %934 = vmatprep.subr.bf16.mxu0 0
        %935 = vmatpush1.bf16.msra.mxu0 0
        %936 = vmatprep.subr.bf16.mxu0 0
        %937 = vmatpush1.bf16.msra.mxu0 0
        %938 = vmatprep.subr.bf16.mxu0 0
        %939 = vmatpush1.bf16.msra.mxu0 0
        %940 = vmatprep.subr.bf16.mxu0 0
        %941 = vmatpush1.bf16.msra.mxu0 0
        %942 = vmatprep.mubr.bf16.mxu0 0
        %943 = vmatmul.mubr.bf16.gmra.mrb[0].mxu0 %v908
        %v944 = vpop.f32.mrb[0].mxu0
        %v945 = vadd.f32 %v893, %v944
        %v946 = vpop.f32.mrb[0].mxu0
        %v947 = vpop.f32.mrb[0].mxu0
        %v948 = vpop.f32.mrb[0].mxu0
        %949 = vdwg.mxu0
        %950 = vst.msk [vmem:[%s340] sm:$0xff] %vm373, %v945
        %s951 = sand.u32 %s161, 1
        %s952 = scalar_lea.sflag [#allocation4], %s951
        %s953 = sand.u32 %s161, 1
        %s954 = smul.addr %s953, 8
        %s955 = scalar_lea.vmem [#allocation11], %s954
        %s956 = sand.u32 %s189, 1
        %s957 = scalar_lea.sflag [#allocation13], %s956
        %s958 = sand.u32 %s189, 1
        %s959 = smul.addr %s958, 32
        %s960 = scalar_lea.vmem [#allocation12], %s959
        // Predicated region
        $region61: #{tpu_custom_call.1} parent=39 // pred_check
          %p961 = pneg %p171
        $region62: #{tpu_custom_call.1} parent=39 // pred_check_branch
          %963 = sbr.rel (%p961) target = $region64
        $region63: #{tpu_custom_call.1} parent=39 // pred_region
          %s965 = ssub.s32 128, 128
          %966 = vsyncadd %s952, %s965
          %s967 = sadd.s32 %s34, %s33
          %s968 = smul.addr %s967, 128
          %s969 = scalar_lea.hbm %s5, %s968
          %s971 = sshll.u32 %s955, 4
          %s972 = int_to_ptr.vmem [resolvable:$true] %s971
          %974 = dma.vmem_to_hbm [thread:$0]  %s972, 128, %s969, %s952
        $region64: #{tpu_custom_call.1} parent=39 // pred_fallthru
          _
        // Predicated region
        $region65: #{tpu_custom_call.1} parent=39 // pred_check
          %p975 = pneg %p199
        $region66: #{tpu_custom_call.1} parent=39 // pred_check_branch
          %977 = sbr.rel (%p975) target = $region68
        $region67: #{tpu_custom_call.1} parent=39 // pred_region
          %s979 = ssub.s32 512, 512
          %980 = vsyncadd %s957, %s979
          %s981 = smul.addr %s33, 4
          %s982 = sadd.s32 %s34, %s981
          %s983 = smul.addr %s982, 128
          %s984 = scalar_lea.hbm %s6, %s983
          %s985 = sshll.u32 %s960, 4
          %s986 = int_to_ptr.vmem [resolvable:$true] %s985
          %991 = dma.vmem_to_hbm [thread:$0]  %s986, 512, %s984, %s957, 128, 128, 8
        $region68: #{tpu_custom_call.1} parent=39 // pred_fallthru
          _
      $region40: #{tpu_custom_call.1} parent=5 // pred_fallthru
        _
      %p992 = scmp.le.s32.totalorder 2, %s24
      // Predicated region
      $region69: #{tpu_custom_call.1} parent=5 // pred_check
        %p993 = pneg %p992
      $region70: #{tpu_custom_call.1} parent=5 // pred_check_branch
        %995 = sbr.rel (%p993) target = $region72
      $region71: #{tpu_custom_call.1} parent=5 // pred_region
        %s996 = ssub.s32 %s24, 2
        // Predicated region
        $region73: #{tpu_custom_call.1} parent=71 // pred_check
          %p997 = pneg %p177
        $region74: #{tpu_custom_call.1} parent=71 // pred_check_branch
          %999 = sbr.rel (%p997) target = $region76
        $region75: #{tpu_custom_call.1} parent=71 // pred_region
          %s1000 = sand.u32 %s162, 1
          %s1001 = scalar_lea.sflag [#allocation4], %s1000
          %s1002 = sand.u32 %s162, 1
          %s1003 = smul.addr %s1002, 8
          %s1004 = scalar_lea.vmem [#allocation11], %s1003
          %1005 = dma.done %s1001, 128
        $region76: #{tpu_custom_call.1} parent=71 // pred_fallthru
          _
        // Predicated region
        $region77: #{tpu_custom_call.1} parent=71 // pred_check
          %p1006 = pneg %p205
        $region78: #{tpu_custom_call.1} parent=71 // pred_check_branch
          %1008 = sbr.rel (%p1006) target = $region80
        $region79: #{tpu_custom_call.1} parent=71 // pred_region
          %s1009 = sand.u32 %s190, 1
          %s1010 = scalar_lea.sflag [#allocation13], %s1009
          %s1011 = sand.u32 %s190, 1
          %s1012 = smul.addr %s1011, 32
          %s1013 = scalar_lea.vmem [#allocation12], %s1012
          %1014 = dma.done %s1010, 512
        $region80: #{tpu_custom_call.1} parent=71 // pred_fallthru
          _
      $region72: #{tpu_custom_call.1} parent=5 // pred_fallthru
        _
    $region6: #{tpu_custom_call.1} parent=1 // loop_footer
      %s28 = sadd.s32 1, %s24
    $region7: #{tpu_custom_call.1} parent=1 // loop_footer_branch
      %23 = sbr.rel target = $region3
    $region8: #{tpu_custom_call.1} parent=1 // loop_exit
      _
    %1015 = vsyncpa [#allocation3], 1
    %s1016 = scalar_lea.sflag [#allocation3], 1
    %1017 = vsyncpa %s1016, 1
    %1018 = vsyncpa [#allocation6], 1
    %1019 = vsyncpa [#allocation9], 1
    %1020 = vsyncpa [#allocation4], 1
    %s1021 = scalar_lea.sflag [#allocation4], 1
    %1022 = vsyncpa %s1021, 1
    %1023 = vsyncpa [#allocation13], 1
    %s1024 = scalar_lea.sflag [#allocation13], 1
    %1025 = vsyncpa %s1024, 1

</llo_original>
